<compile_context>
chip_gen: v5e
topology: v5e:2x2
jax: 0.10.0
libtpu: 0.0.40
codegen_flags: <defaults>
</compile_context>

<pallas_src>
import functools

import numpy as np
import jax
import jax.numpy as jnp
from jax.experimental import pallas as pl
from jax.experimental.pallas import tpu as pltpu


def build_pe(max_len: int, embed_dim: int, dtype=jnp.float32):
    """Deterministic sin/cos positional table, identical math to the torch loop."""
    assert embed_dim % 2 == 0
    i = np.arange(max_len, dtype=np.float64)[:, None]          # (max_len, 1)
    j = np.arange(embed_dim, dtype=np.float64)[None, :]        # (1, D)
    even_mask = (np.arange(embed_dim) % 2) == 0
    freq_even = np.power(10000.0, -j / embed_dim)
    freq_odd = np.power(10000.0, -(j - 1.0) / embed_dim)
    pe = np.where(even_mask, np.sin(i * freq_even), np.cos(i * freq_odd))
    return jnp.asarray(pe[None, :, :], dtype=dtype)            # (1, max_len, D)


# ---------------- kernels ----------------

def _pe_add_kernel(x_ref, pe_ref, o_ref):
    # eval-mode forward: out = x + pe  (dropout is identity)
    # x_ref: (bn, tl), pe_ref: (1, tl) broadcast over the batch rows.
    o_ref[...] = (x_ref[...] + pe_ref[...]).astype(o_ref.dtype)


def _mix32(x):
    # splitmix32 finalizer (good avalanche, pure u32 VPU ops).
    x = x ^ (x >> jnp.uint32(16))
    x = x * jnp.uint32(0x7FEB352D)
    x = x ^ (x >> jnp.uint32(15))
    x = x * jnp.uint32(0x846CA68B)
    x = x ^ (x >> jnp.uint32(16))
    return x


def _pe_add_dropout_kernel(seed_ref, x_ref, pe_ref, o_ref, *, p, bn, tl):
    # train-mode forward: out = inverted-dropout(x + pe)
    # f32 compute, cast only on the final store (v5e-friendly).
    y = x_ref[...].astype(jnp.float32) + pe_ref[...].astype(jnp.float32)

    # Stateless position-keyed RNG: hash(seed, global_row, global_col).
    # Deterministic per element regardless of tiling / core assignment, so both
    # grid axes can stay "parallel".
    row = jax.lax.broadcasted_iota(jnp.int32, (bn, tl), 0) + pl.program_id(1) * bn
    col = jax.lax.broadcasted_iota(jnp.int32, (bn, tl), 1) + pl.program_id(0) * tl
    seed = seed_ref[0].astype(jnp.uint32)
    h = _mix32(seed ^ jnp.uint32(0x9E3779B9))
    bits = _mix32(_mix32(row.astype(jnp.uint32) + h) + col.astype(jnp.uint32))

    # Integer threshold compare on the top 24 bits (no float uniform / divide).
    thr = jnp.uint32(min(int(round(p * (1 << 24))), (1 << 24) - 1))
    keep = (bits >> jnp.uint32(8)) >= thr
    scale = jnp.float32(1.0 / (1.0 - p))
    o_ref[...] = jnp.where(keep, y * scale, jnp.float32(0.0)).astype(o_ref.dtype)


# ---------------- tiling helpers ----------------

def _pick_tiles(N, L, itemsize):
    """Pick (bn, tl): lane-dense ~2 MiB blocks that satisfy the (8,128) rule."""
    sub = 8 if itemsize >= 4 else 16          # sublane granule (f32 vs bf16)
    bn = sub if N >= sub else N               # small batches: take the full dim
    target_bytes = 2 * 1024 * 1024            # ~2 MiB x-block -> double-buffered
                                              # working set well under 32 MiB (v7x-safe)
    if L % 128 == 0:
        tl = min(L, max(128, (target_bytes // (itemsize * bn)) // 128 * 128))
        while L % tl != 0:                    # uniform blocks -> unmasked vst
            tl -= 128
    else:
        tl = L                                # BlockSpec rule: multiple of 128 or full dim
    return bn, tl


# ---------------- wrapper ----------------

def positional_encoding(x, pe_full, *, p=0.1, training=False, seed=0):
    """x: (N, S, D); pe_full: (1, max_len, D). Returns (N, S, D)."""
    N, S, D = x.shape
    L = S * D
    itemsize = x.dtype.itemsize

    # Flatten (S, D) -> lane-dense last dim; pe broadcasts over batch.
    x2 = x.reshape(N, L)
    pe2 = pe_full[:, :S, :].reshape(1, L).astype(x.dtype)

    bn, tl = _pick_tiles(N, L, itemsize)
    # L tiles outer, batch inner: pe block index is constant across the inner
    # axis, so Pallas fetches each pe tile from HBM only once.
    grid = (pl.cdiv(L, tl), pl.cdiv(N, bn))

    x_spec = pl.BlockSpec((bn, tl), lambda j, i: (i, j))
    pe_spec = pl.BlockSpec((1, tl), lambda j, i: (0, j))
    o_spec = pl.BlockSpec((bn, tl), lambda j, i: (i, j))
    out_shape = jax.ShapeDtypeStruct((N, L), x.dtype)

    block_bytes = bn * tl * itemsize
    vmem_limit = int(min(100 * 2**20,
                         max(4 * 2**20, 8 * block_bytes + 4 * tl * itemsize + (4 << 20))))
    cparams = pltpu.CompilerParams(
        dimension_semantics=("parallel", "parallel"),
        vmem_limit_bytes=vmem_limit)
    bytes_accessed = (2 * N * L + L) * itemsize   # x in + out + pe in

    if not training:
        out2 = pl.pallas_call(
            _pe_add_kernel,
            out_shape=out_shape,
            grid=grid,
            in_specs=[x_spec, pe_spec],
            out_specs=o_spec,
            compiler_params=cparams,
            cost_estimate=pl.CostEstimate(flops=N * L, transcendentals=0,
                                          bytes_accessed=bytes_accessed),
        )(x2, pe2)
        return out2.reshape(N, S, D)

    seed_arr = jnp.asarray([seed], dtype=jnp.int32)
    kernel = functools.partial(_pe_add_dropout_kernel, p=float(p), bn=bn, tl=tl)
    out2 = pl.pallas_call(
        kernel,
        out_shape=out_shape,
        grid=grid,
        in_specs=[pl.BlockSpec(memory_space=pltpu.MemorySpace.SMEM), x_spec, pe_spec],
        out_specs=o_spec,
        compiler_params=cparams,
        cost_estimate=pl.CostEstimate(flops=12 * N * L, transcendentals=0,
                                      bytes_accessed=bytes_accessed),
    )(seed_arr, x2, pe2)
    return out2.reshape(N, S, D)


if __name__ == "__main__":
    N, S, D = 2, 8, 32
    MAX_LEN = 64
    P_DROP = 0.1

    key = jax.random.PRNGKey(0)
    x = jax.random.normal(key, (N, S, D), dtype=jnp.float32)
    pe_full = build_pe(MAX_LEN, D)

    ref = np.asarray(x) + np.asarray(pe_full[:, :S, :])

    # --- eval mode (dropout is identity): check exactly against x + pe ---
    out_eval = jax.block_until_ready(
        positional_encoding(x, pe_full, p=P_DROP, training=False))
    np.testing.assert_allclose(np.asarray(out_eval), ref, rtol=1e-6, atol=1e-6)

    # --- train mode: every element is either 0 or (x+pe)/(1-p) ---
    out_train = jax.block_until_ready(
        positional_encoding(x, pe_full, p=P_DROP, training=True, seed=1234))
    out_train_np = np.asarray(out_train)
    scaled = ref / (1.0 - P_DROP)
    is_zero = np.isclose(out_train_np, 0.0, atol=1e-6)
    is_kept = np.isclose(out_train_np, scaled, rtol=1e-5, atol=1e-5)
    assert np.all(is_zero | is_kept), "dropout output has unexpected values"
    drop_frac = float(np.mean(is_zero & ~is_kept))
    assert 0.0 < drop_frac < 0.5, f"implausible dropout rate: {drop_frac}"

    print("KERNEL_OK")
</pallas_src>

<mosaic_0001>
module attributes {stable_mosaic.version = 11 : i64} {
  func.func @_pe_add_kernel(%arg0: i32, %arg1: i32, %arg2: memref<2x256xf32, #tpu.memory_space<vmem>>, %arg3: memref<1x256xf32, #tpu.memory_space<vmem>>, %arg4: memref<2x256xf32, #tpu.memory_space<vmem>>) attributes {dimension_semantics = [#tpu.dimension_semantics<parallel>, #tpu.dimension_semantics<parallel>], iteration_bounds = array<i64: 1, 1>, scalar_prefetch = 0 : i64, scratch_operands = 0 : i64, tpu.core_type = #tpu.core_type<tc>, window_params = [{transform_indices = @transform_0, window_bounds = array<i64: 2, 256>}, {transform_indices = @transform_1, window_bounds = array<i64: 1, 256>}, {transform_indices = @transform_2, window_bounds = array<i64: 2, 256>}]} {
    %c0 = arith.constant 0 : index
    %c0_0 = arith.constant 0 : index
    %0 = vector.load %arg2[%c0, %c0_0] : memref<2x256xf32, #tpu.memory_space<vmem>>, vector<2x256xf32>
    %c0_1 = arith.constant 0 : index
    %c0_2 = arith.constant 0 : index
    %1 = vector.load %arg3[%c0_1, %c0_2] : memref<1x256xf32, #tpu.memory_space<vmem>>, vector<1x256xf32>
    %2 = vector.broadcast %1 : vector<1x256xf32> to vector<2x256xf32>
    %3 = arith.addf %0, %2 : vector<2x256xf32>
    %c0_3 = arith.constant 0 : index
    %c0_4 = arith.constant 0 : index
    %4 = vector.load %arg4[%c0_3, %c0_4] : memref<2x256xf32, #tpu.memory_space<vmem>>, vector<2x256xf32>
    tpu.vector_store %arg4[%c0_3, %c0_4], %3 {strides = array<i32>} : memref<2x256xf32, #tpu.memory_space<vmem>>, vector<2x256xf32>,
    return
  }
  func.func @transform_0(%arg0: i32, %arg1: i32) -> (i32, i32) {
    %c0_i32 = arith.constant 0 : i32
    return %arg1, %arg0 : i32, i32
  }
  func.func @transform_1(%arg0: i32, %arg1: i32) -> (i32, i32) {
    %c0_i32 = arith.constant 0 : i32
    %c0_i32_0 = arith.constant 0 : i32
    return %c0_i32, %arg0 : i32, i32
  }
  func.func @transform_2(%arg0: i32, %arg1: i32) -> (i32, i32) {
    %c0_i32 = arith.constant 0 : i32
    return %arg1, %arg0 : i32, i32
  }
}

</mosaic_0001>

<llo_original>
// kernel: tpu_custom_call.1
$region0: #{tpu_custom_call.1}
  #allocation0 [shape = 'u32[]', space=smem, size = 0x4, offset = 0x4, fixed_abs, tag = 'smem constant byte address 0x4 - core index']
  #allocation1 [shape = 'u32[72,128]{1,0:T(1,128)}', space=vmem, size = 0x9000, scoped, tag = 'internal scratch']
  %s0 = inlined_call_operand.hbm [shape: f32[2,256], index: 0, kind: input, shape index: {}]
  %s1 = inlined_call_operand.hbm [shape: f32[1,256], index: 1, kind: input, shape index: {}]
  %s2 = inlined_call_operand.hbm [shape: f32[2,256], index: 2, kind: output, shape index: {}]
  %s3 = sld [smem:[#allocation0]]
  $region26: #{tpu_custom_call.1} parent=0
    _
  %s5 = ssub.s32 1, %s3
  %s6 = scalar_select 0, %s5, %s3
  $region1: #{tpu_custom_call.1} parent=0
    #allocation2 [shape = 'u8[2048]{0}', space=vmem, size = 0x800, scoped, tag = 'input window, operand 0, single buffered']
    #allocation3 [shape = 's32[1]{0}', space=sflag, size = 0x4, scoped, tag = 'scoped memory for tpu_custom_call.1']
    #allocation4 [shape = 's32[1]{0}', space=sflag, size = 0x4, scoped, tag = 'scoped memory for tpu_custom_call.1']
    #allocation5 [shape = 'u8[1024]{0}', space=vmem, size = 0x400, scoped, tag = 'input window, operand 1, single buffered']
    #allocation6 [shape = 's32[1]{0}', space=sflag, size = 0x4, scoped, tag = 'scoped memory for tpu_custom_call.1']
    #allocation7 [shape = 'u8[2048]{0}', space=vmem, size = 0x800, scoped, tag = 'output window, operand 0, single buffered']
    %7 = vsyncpa [#allocation3], 0
    %8 = vsyncpa [#allocation6], 0
    %9 = vsyncpa [#allocation4], 0
    // Predicated region
    $region2: #{tpu_custom_call.1} parent=1 // pred_check
      _
    $region3: #{tpu_custom_call.1} parent=1 // pred_check_branch
      %11 = sbr.rel (0) target = $region5
    $region4: #{tpu_custom_call.1} parent=1 // pred_region
      %13 = vsyncadd [#allocation3], 0
      %s15 = sshll.u32 %s0, 4
      %s16 = int_to_ptr.hbm [resolvable:$true] %s15
      %s17 = sshll.u32 [#allocation2], 4
      %s18 = int_to_ptr.vmem [resolvable:$true] %s17
      %20 = dma.hbm_to_vmem [thread:$0]  %s16, 64, %s18, [#allocation3]
    $region5: #{tpu_custom_call.1} parent=1 // pred_fallthru
      _
    // Predicated region
    $region6: #{tpu_custom_call.1} parent=1 // pred_check
      _
    $region7: #{tpu_custom_call.1} parent=1 // pred_check_branch
      %22 = sbr.rel (0) target = $region9
    $region8: #{tpu_custom_call.1} parent=1 // pred_region
      %24 = vsyncadd [#allocation6], 0
      %s26 = sshll.u32 %s1, 4
      %s27 = int_to_ptr.hbm [resolvable:$true] %s26
      %s28 = sshll.u32 [#allocation5], 4
      %s29 = int_to_ptr.vmem [resolvable:$true] %s28
      %31 = dma.hbm_to_vmem [thread:$0]  %s27, 32, %s29, [#allocation6]
    $region9: #{tpu_custom_call.1} parent=1 // pred_fallthru
      _
    // Predicated region
    $region10: #{tpu_custom_call.1} parent=1 // pred_check
      _
    $region11: #{tpu_custom_call.1} parent=1 // pred_check_branch
      %33 = sbr.rel (0) target = $region13
    $region12: #{tpu_custom_call.1} parent=1 // pred_region
      %35 = dma.done [#allocation3], 64
    $region13: #{tpu_custom_call.1} parent=1 // pred_fallthru
      _
    // Predicated region
    $region14: #{tpu_custom_call.1} parent=1 // pred_check
      _
    $region15: #{tpu_custom_call.1} parent=1 // pred_check_branch
      %37 = sbr.rel (0) target = $region17
    $region16: #{tpu_custom_call.1} parent=1 // pred_region
      %39 = dma.done [#allocation6], 32
    $region17: #{tpu_custom_call.1} parent=1 // pred_fallthru
      _
    %v40 = vld [vmem:[#allocation2] sm:$0xf]
    %v41 = vld [vmem:[#allocation5] sm:$0x3]
    %v43 = vperm.slane %v41, 0
    %v44 = vperm.slane %v41, 1
    %v45 = vrot.slane %v44, 6
    %vm46 = vcmask 1041408
    %v47 = vsel %vm46, %v43, %v45
    %v49 = vadd.f32 %v40, %v47
    %50 = vst [vmem:[#allocation7] sm:$0xf] %v49
    // Predicated region
    $region18: #{tpu_custom_call.1} parent=1 // pred_check
      _
    $region19: #{tpu_custom_call.1} parent=1 // pred_check_branch
      %52 = sbr.rel (0) target = $region21
    $region20: #{tpu_custom_call.1} parent=1 // pred_region
      %54 = vsyncadd [#allocation4], 0
      %s56 = sshll.u32 [#allocation7], 4
      %s57 = int_to_ptr.vmem [resolvable:$true] %s56
      %s58 = sshll.u32 %s2, 4
      %s59 = int_to_ptr.hbm [resolvable:$true] %s58
      %61 = dma.vmem_to_hbm [thread:$0]  %s57, 64, %s59, [#allocation4]
    $region21: #{tpu_custom_call.1} parent=1 // pred_fallthru
      _
    // Predicated region
    $region22: #{tpu_custom_call.1} parent=1 // pred_check
      _
    $region23: #{tpu_custom_call.1} parent=1 // pred_check_branch
      %63 = sbr.rel (0) target = $region25
    $region24: #{tpu_custom_call.1} parent=1 // pred_region
      %65 = dma.done [#allocation4], 64
    $region25: #{tpu_custom_call.1} parent=1 // pred_fallthru
      _
    %66 = vsyncpa [#allocation3], 1
    %67 = vsyncpa [#allocation6], 1
    %68 = vsyncpa [#allocation4], 1

</llo_original>
